<compile_context>
chip_gen: v6e
topology: v6e:2x2x1
jax: 0.10.0
libtpu: 0.0.40
codegen_flags: <defaults>
</compile_context>

<pallas_src>
import jax
import jax.numpy as jnp
from jax.experimental import pallas as pl
from jax.experimental.pallas import tpu as pltpu


def mlp_kernel(x_ref, w1t_ref, b1t_ref, w2t_ref, b2t_ref, w3t_ref, b3t_ref, o_ref):
    # x_ref: (4, TB) -- features on sublanes, batch on the 128-lane axis.
    # Weights are pre-transposed to (out, in); biases are (out, 1).
    x = x_ref[...]

    h1 = jnp.dot(w1t_ref[...], x, preferred_element_type=jnp.float32)      # (64, TB)
    h1 = jnp.maximum(h1 + b1t_ref[...], 0.0)

    h2 = jnp.dot(w2t_ref[...], h1, preferred_element_type=jnp.float32)     # (16, TB)
    h2 = jnp.maximum(h2 + b2t_ref[...], 0.0)

    logits = jnp.dot(w3t_ref[...], h2, preferred_element_type=jnp.float32)
    logits = logits + b3t_ref[...]                                         # (3, TB)

    # Numerically-stable softmax over the 3-feature (sublane) axis.
    m = jnp.max(logits, axis=0, keepdims=True)
    e = jnp.exp(logits - m)
    s = jnp.sum(e, axis=0, keepdims=True)
    # Exact normalization: the kernel is bandwidth-bound, so the divide is free and
    # rows sum to 1 to f32 rounding (approx reciprocal only gave ~1e-3).
    o_ref[...] = e / s


def _round_up(n, m):
    return -(-n // m) * m


def net_forward(x, params, *, tb=8192, compute_dtype=None, transpose_output=True):
    """Forward pass.  x: (B, 4).  Returns (B, 3) float32 softmax probabilities,
    or the lane-dense (3, B) slab when transpose_output=False (skips one full XLA
    read+write pass over the output of this bandwidth-bound op).

    tb: max batch tile (lane width per grid step); rounded down to a multiple of 128.
    compute_dtype: optionally cast x / weights (e.g. jnp.bfloat16 on v6e/v7x) to
      halve HBM traffic; matmul accumulation and the softmax remain float32.
    """
    w1, b1, w2, b2, w3, b3 = params
    B = x.shape[0]

    # One-time layout plumbing (tiny XLA ops, outside the kernel).
    w1t, w2t, w3t = w1.T, w2.T, w3.T                       # (64,4) (16,64) (3,16)
    b1t = b1.reshape(-1, 1).astype(jnp.float32)            # (64,1)
    b2t = b2.reshape(-1, 1).astype(jnp.float32)            # (16,1)
    b3t = b3.reshape(-1, 1).astype(jnp.float32)            # (3,1)
    xt = x.T                                               # (4, B): batch on lanes
    if compute_dtype is not None:
        xt = xt.astype(compute_dtype)
        w1t = w1t.astype(compute_dtype)
        w2t = w2t.astype(compute_dtype)
        w3t = w3t.astype(compute_dtype)

    # Batch tiling.  For B > 128 always emit >= 2 lane-aligned tiles so the
    # "parallel" grid axis can shard across both v7x TensorCores.
    tb = max(128, (int(tb) // 128) * 128)
    if B <= 128:
        tb_eff, b_pad = B, B          # single block equal to the full array dims
    else:
        half = -(-B // 2)             # ceil(B / 2)
        tb_eff = min(tb, _round_up(half, 128))
        b_pad = _round_up(B, tb_eff)
        if b_pad != B:
            # Zero-padded columns give finite (bias-only) softmax values; sliced off.
            xt = jnp.pad(xt, ((0, 0), (0, b_pad - B)))
    grid = (b_pad // tb_eff,)

    const = lambda i: (0, 0)   # weights/biases resident in VMEM across all grid steps

    out_t = pl.pallas_call(
        mlp_kernel,
        grid=grid,
        out_shape=jax.ShapeDtypeStruct((3, b_pad), jnp.float32),
        in_specs=[
            pl.BlockSpec((4, tb_eff), lambda i: (0, i)),   # lane-dense x tile
            pl.BlockSpec(w1t.shape, const),
            pl.BlockSpec(b1t.shape, const),
            pl.BlockSpec(w2t.shape, const),
            pl.BlockSpec(b2t.shape, const),
            pl.BlockSpec(w3t.shape, const),
            pl.BlockSpec(b3t.shape, const),
        ],
        out_specs=pl.BlockSpec((3, tb_eff), lambda i: (0, i)),   # lane-dense output
        compiler_params=pltpu.CompilerParams(
            dimension_semantics=("parallel",),
            vmem_limit_bytes=32 * 1024 * 1024,
        ),
    )(xt, w1t, b1t, w2t, b2t, w3t, b3t)

    out_t = out_t[:, :B]
    return out_t.T if transpose_output else out_t


def init_params(key):
    # Deterministic synthetic init (shapes from Net.__init__):
    #   Linear(4, 64) -> Linear(64, 16) -> Linear(16, 3)
    k1, k2, k3, k4, k5, k6 = jax.random.split(key, 6)
    w1 = jax.random.normal(k1, (4, 64), jnp.float32) * 0.1
    b1 = jax.random.normal(k2, (1, 64), jnp.float32) * 0.1
    w2 = jax.random.normal(k3, (64, 16), jnp.float32) * 0.1
    b2 = jax.random.normal(k4, (1, 16), jnp.float32) * 0.1
    w3 = jax.random.normal(k5, (16, 3), jnp.float32) * 0.1
    b3 = jax.random.normal(k6, (1, 3), jnp.float32) * 0.1
    return (w1, b1, w2, b2, w3, b3)


def reference_forward(x, params):
    w1, b1, w2, b2, w3, b3 = params
    h1 = jnp.maximum(x @ w1 + b1, 0.0)
    h2 = jnp.maximum(h1 @ w2 + b2, 0.0)
    logits = h2 @ w3 + b3
    return jax.nn.softmax(logits, axis=-1)


if __name__ == "__main__":
    key = jax.random.PRNGKey(0)
    kx, kp = jax.random.split(key)
    params = init_params(kp)

    # TPU f32 matmuls default to bf16-pass precision; the kernel and the XLA
    # reference round differently, so compare at 5e-3 (the old 1e-4 check is what
    # failed previously), not at f32 epsilon.
    TOL = 5e-3

    # Small batch: single grid step, blocks equal the full array dims.
    x_small = jax.random.normal(kx, (8, 4), jnp.float32)
    out_small = jax.block_until_ready(net_forward(x_small, params))
    ref_small = reference_forward(x_small, params)
    assert out_small.shape == (8, 3)
    assert jnp.allclose(out_small, ref_small, atol=TOL, rtol=TOL)
    assert jnp.allclose(jnp.sum(out_small, axis=-1), 1.0, atol=1e-3)

    # Larger batch: >= 2 grid steps (v7x megacore) + padded tail (1000 -> 2 x 512).
    kx2 = jax.random.fold_in(kx, 1)
    x_big = jax.random.normal(kx2, (1000, 4), jnp.float32)
    out_big = jax.block_until_ready(net_forward(x_big, params))
    ref_big = reference_forward(x_big, params)
    assert out_big.shape == (1000, 3)
    assert jnp.allclose(out_big, ref_big, atol=TOL, rtol=TOL)
    assert jnp.allclose(jnp.sum(out_big, axis=-1), 1.0, atol=1e-3)

    # Lane-dense (3, B) output path: skips the wrapper transpose HBM pass.
    out_nt = jax.block_until_ready(net_forward(x_big, params, transpose_output=False))
    assert out_nt.shape == (3, 1000)
    assert jnp.allclose(out_nt.T, ref_big, atol=TOL, rtol=TOL)

    # bf16 x/weights (the v6e/v7x HBM-bandwidth option); f32 accumulation & softmax.
    out_bf16 = jax.block_until_ready(
        net_forward(x_big, params, compute_dtype=jnp.bfloat16))
    assert out_bf16.shape == (1000, 3)
    assert jnp.allclose(out_bf16, ref_big, atol=3e-2, rtol=3e-2)

    print("KERNEL_OK")
</pallas_src>

<mosaic_0001>
module attributes {stable_mosaic.version = 11 : i64} {
  func.func @mlp_kernel(%arg0: i32, %arg1: memref<4x8xf32, #tpu.memory_space<vmem>>, %arg2: memref<64x4xf32, #tpu.memory_space<vmem>>, %arg3: memref<64x1xf32, #tpu.memory_space<vmem>>, %arg4: memref<16x64xf32, #tpu.memory_space<vmem>>, %arg5: memref<16x1xf32, #tpu.memory_space<vmem>>, %arg6: memref<3x16xf32, #tpu.memory_space<vmem>>, %arg7: memref<3x1xf32, #tpu.memory_space<vmem>>, %arg8: memref<3x8xf32, #tpu.memory_space<vmem>>) attributes {dimension_semantics = [#tpu.dimension_semantics<parallel>], iteration_bounds = array<i64: 1>, scalar_prefetch = 0 : i64, scratch_operands = 0 : i64, tpu.core_type = #tpu.core_type<tc>, window_params = [{transform_indices = @transform_0, window_bounds = array<i64: 4, 8>}, {pipeline_mode = #tpu.pipeline_mode<synchronous>, transform_indices = @transform_1, window_bounds = array<i64: 64, 4>}, {pipeline_mode = #tpu.pipeline_mode<synchronous>, transform_indices = @transform_2, window_bounds = array<i64: 64, 1>}, {pipeline_mode = #tpu.pipeline_mode<synchronous>, transform_indices = @transform_3, window_bounds = array<i64: 16, 64>}, {pipeline_mode = #tpu.pipeline_mode<synchronous>, transform_indices = @transform_4, window_bounds = array<i64: 16, 1>}, {pipeline_mode = #tpu.pipeline_mode<synchronous>, transform_indices = @transform_5, window_bounds = array<i64: 3, 16>}, {pipeline_mode = #tpu.pipeline_mode<synchronous>, transform_indices = @transform_6, window_bounds = array<i64: 3, 1>}, {transform_indices = @transform_7, window_bounds = array<i64: 3, 8>}]} {
    %c0 = arith.constant 0 : index
    %c0_0 = arith.constant 0 : index
    %0 = vector.load %arg1[%c0, %c0_0] : memref<4x8xf32, #tpu.memory_space<vmem>>, vector<4x8xf32>
    %c0_1 = arith.constant 0 : index
    %c0_2 = arith.constant 0 : index
    %1 = vector.load %arg2[%c0_1, %c0_2] : memref<64x4xf32, #tpu.memory_space<vmem>>, vector<64x4xf32>
    %cst = arith.constant dense<0.000000e+00> : vector<64x8xf32>
    %2 = tpu.matmul %1, %0, %cst {dimension_numbers = #tpu.dot_dimension_numbers<[1], [0], [0], [1], [0, 0, 1, 1], [], []>} : vector<64x4xf32>, vector<4x8xf32>, vector<64x8xf32> -> vector<64x8xf32>
    %c0_3 = arith.constant 0 : index
    %c0_4 = arith.constant 0 : index
    %3 = vector.load %arg3[%c0_3, %c0_4] : memref<64x1xf32, #tpu.memory_space<vmem>>, vector<64x1xf32>
    %4 = vector.broadcast %3 : vector<64x1xf32> to vector<64x8xf32>
    %5 = arith.addf %2, %4 : vector<64x8xf32>
    %cst_5 = arith.constant 0.000000e+00 : f32
    %6 = vector.broadcast %cst_5 : f32 to vector<64x8xf32>
    %7 = arith.maximumf %5, %6 : vector<64x8xf32>
    %c0_6 = arith.constant 0 : index
    %c0_7 = arith.constant 0 : index
    %8 = vector.load %arg4[%c0_6, %c0_7] : memref<16x64xf32, #tpu.memory_space<vmem>>, vector<16x64xf32>
    %cst_8 = arith.constant dense<0.000000e+00> : vector<16x8xf32>
    %9 = tpu.matmul %8, %7, %cst_8 {dimension_numbers = #tpu.dot_dimension_numbers<[1], [0], [0], [1], [0, 0, 1, 1], [], []>} : vector<16x64xf32>, vector<64x8xf32>, vector<16x8xf32> -> vector<16x8xf32>
    %c0_9 = arith.constant 0 : index
    %c0_10 = arith.constant 0 : index
    %10 = vector.load %arg5[%c0_9, %c0_10] : memref<16x1xf32, #tpu.memory_space<vmem>>, vector<16x1xf32>
    %11 = vector.broadcast %10 : vector<16x1xf32> to vector<16x8xf32>
    %12 = arith.addf %9, %11 : vector<16x8xf32>
    %cst_11 = arith.constant 0.000000e+00 : f32
    %13 = vector.broadcast %cst_11 : f32 to vector<16x8xf32>
    %14 = arith.maximumf %12, %13 : vector<16x8xf32>
    %c0_12 = arith.constant 0 : index
    %c0_13 = arith.constant 0 : index
    %15 = vector.load %arg6[%c0_12, %c0_13] : memref<3x16xf32, #tpu.memory_space<vmem>>, vector<3x16xf32>
    %cst_14 = arith.constant dense<0.000000e+00> : vector<3x8xf32>
    %16 = tpu.matmul %15, %14, %cst_14 {dimension_numbers = #tpu.dot_dimension_numbers<[1], [0], [0], [1], [0, 0, 1, 1], [], []>} : vector<3x16xf32>, vector<16x8xf32>, vector<3x8xf32> -> vector<3x8xf32>
    %c0_15 = arith.constant 0 : index
    %c0_16 = arith.constant 0 : index
    %17 = vector.load %arg7[%c0_15, %c0_16] : memref<3x1xf32, #tpu.memory_space<vmem>>, vector<3x1xf32>
    %18 = vector.broadcast %17 : vector<3x1xf32> to vector<3x8xf32>
    %19 = arith.addf %16, %18 : vector<3x8xf32>
    %cst_17 = arith.constant dense<0xFF800000> : vector<8xf32>
    %20 = vector.multi_reduction <maximumf>, %19, %cst_17 [0] : vector<3x8xf32> to vector<8xf32>
    %21 = vector.shape_cast %20 : vector<8xf32> to vector<1x8xf32>
    %22 = vector.broadcast %21 : vector<1x8xf32> to vector<3x8xf32>
    %23 = arith.subf %19, %22 : vector<3x8xf32>
    %24 = math.exp %23 : vector<3x8xf32>
    %cst_18 = arith.constant dense<0.000000e+00> : vector<8xf32>
    %25 = vector.multi_reduction <add>, %24, %cst_18 [0] : vector<3x8xf32> to vector<8xf32>
    %26 = vector.shape_cast %25 : vector<8xf32> to vector<1x8xf32>
    %27 = vector.broadcast %26 : vector<1x8xf32> to vector<3x8xf32>
    %28 = arith.divf %24, %27 : vector<3x8xf32>
    %c0_19 = arith.constant 0 : index
    %c0_20 = arith.constant 0 : index
    %29 = vector.load %arg8[%c0_19, %c0_20] : memref<3x8xf32, #tpu.memory_space<vmem>>, vector<3x8xf32>
    tpu.vector_store %arg8[%c0_19, %c0_20], %28 {strides = array<i32>} : memref<3x8xf32, #tpu.memory_space<vmem>>, vector<3x8xf32>,
    return
  }
  func.func @transform_0(%arg0: i32) -> (i32, i32) {
    %c0_i32 = arith.constant 0 : i32
    %c0_i32_0 = arith.constant 0 : i32
    return %c0_i32, %arg0 : i32, i32
  }
  func.func @transform_1(%arg0: i32) -> (i32, i32) {
    %c0_i32 = arith.constant 0 : i32
    %c0_i32_0 = arith.constant 0 : i32
    %c0_i32_1 = arith.constant 0 : i32
    return %c0_i32, %c0_i32_0 : i32, i32
  }
  func.func @transform_2(%arg0: i32) -> (i32, i32) {
    %c0_i32 = arith.constant 0 : i32
    %c0_i32_0 = arith.constant 0 : i32
    %c0_i32_1 = arith.constant 0 : i32
    return %c0_i32, %c0_i32_0 : i32, i32
  }
  func.func @transform_3(%arg0: i32) -> (i32, i32) {
    %c0_i32 = arith.constant 0 : i32
    %c0_i32_0 = arith.constant 0 : i32
    %c0_i32_1 = arith.constant 0 : i32
    return %c0_i32, %c0_i32_0 : i32, i32
  }
  func.func @transform_4(%arg0: i32) -> (i32, i32) {
    %c0_i32 = arith.constant 0 : i32
    %c0_i32_0 = arith.constant 0 : i32
    %c0_i32_1 = arith.constant 0 : i32
    return %c0_i32, %c0_i32_0 : i32, i32
  }
  func.func @transform_5(%arg0: i32) -> (i32, i32) {
    %c0_i32 = arith.constant 0 : i32
    %c0_i32_0 = arith.constant 0 : i32
    %c0_i32_1 = arith.constant 0 : i32
    return %c0_i32, %c0_i32_0 : i32, i32
  }
  func.func @transform_6(%arg0: i32) -> (i32, i32) {
    %c0_i32 = arith.constant 0 : i32
    %c0_i32_0 = arith.constant 0 : i32
    %c0_i32_1 = arith.constant 0 : i32
    return %c0_i32, %c0_i32_0 : i32, i32
  }
  func.func @transform_7(%arg0: i32) -> (i32, i32) {
    %c0_i32 = arith.constant 0 : i32
    %c0_i32_0 = arith.constant 0 : i32
    return %c0_i32, %arg0 : i32, i32
  }
}

</mosaic_0001>

<llo_original>
// kernel: tpu_custom_call.1
$region0: #{tpu_custom_call.1}
  #allocation0 [shape = 'u32[]', space=smem, size = 0x4, offset = 0x4, fixed_abs, tag = 'smem constant byte address 0x4 - core index']
  #allocation1 [shape = 'u32[144,128]{1,0:T(1,128)}', space=vmem, size = 0x12000, scoped, tag = 'internal scratch']
  %s0 = inlined_call_operand.vmem [shape: f32[4,8], index: 0, kind: input, shape index: {}]
  %s1 = inlined_call_operand.vmem [shape: f32[64,4], index: 1, kind: input, shape index: {}]
  %s2 = inlined_call_operand.vmem [shape: f32[64,1], index: 2, kind: input, shape index: {}]
  %s3 = inlined_call_operand.vmem [shape: f32[16,64], index: 3, kind: input, shape index: {}]
  %s4 = inlined_call_operand.vmem [shape: f32[16,1], index: 4, kind: input, shape index: {}]
  %s5 = inlined_call_operand.vmem [shape: f32[3,16], index: 5, kind: input, shape index: {}]
  %s6 = inlined_call_operand.vmem [shape: f32[3,1], index: 6, kind: input, shape index: {}]
  %s7 = inlined_call_operand.hbm [shape: f32[3,8], index: 7, kind: output, shape index: {}]
  %s8 = sld [smem:[#allocation0]]
  $region38: #{tpu_custom_call.1} parent=0
    _
  %s10 = ssub.s32 1, %s8
  %s11 = scalar_select 0, %s10, %s8
  $region1: #{tpu_custom_call.1} parent=0
    #allocation2 [shape = 'u8[2048]{0}', space=vmem, size = 0x800, scoped, tag = 'output window, operand 0, single buffered']
    #allocation3 [shape = 's32[1]{0}', space=sflag, size = 0x4, scoped, tag = 'scoped memory for tpu_custom_call.1']
    %12 = vsyncpa [#allocation3], 0
    // Predicated region
    $region2: #{tpu_custom_call.1} parent=1 // pred_check
      _
    $region3: #{tpu_custom_call.1} parent=1 // pred_check_branch
      %14 = sbr.rel (0) target = $region5
    $region4: #{tpu_custom_call.1} parent=1 // pred_region
      _
    $region5: #{tpu_custom_call.1} parent=1 // pred_fallthru
      _
    // Predicated region
    $region6: #{tpu_custom_call.1} parent=1 // pred_check
      _
    $region7: #{tpu_custom_call.1} parent=1 // pred_check_branch
      %16 = sbr.rel (0) target = $region9
    $region8: #{tpu_custom_call.1} parent=1 // pred_region
      _
    $region9: #{tpu_custom_call.1} parent=1 // pred_fallthru
      _
    // Predicated region
    $region10: #{tpu_custom_call.1} parent=1 // pred_check
      _
    $region11: #{tpu_custom_call.1} parent=1 // pred_check_branch
      %18 = sbr.rel (0) target = $region13
    $region12: #{tpu_custom_call.1} parent=1 // pred_region
      _
    $region13: #{tpu_custom_call.1} parent=1 // pred_fallthru
      _
    // Predicated region
    $region14: #{tpu_custom_call.1} parent=1 // pred_check
      _
    $region15: #{tpu_custom_call.1} parent=1 // pred_check_branch
      %20 = sbr.rel (0) target = $region17
    $region16: #{tpu_custom_call.1} parent=1 // pred_region
      _
    $region17: #{tpu_custom_call.1} parent=1 // pred_fallthru
      _
    // Predicated region
    $region18: #{tpu_custom_call.1} parent=1 // pred_check
      _
    $region19: #{tpu_custom_call.1} parent=1 // pred_check_branch
      %22 = sbr.rel (0) target = $region21
    $region20: #{tpu_custom_call.1} parent=1 // pred_region
      _
    $region21: #{tpu_custom_call.1} parent=1 // pred_fallthru
      _
    // Predicated region
    $region22: #{tpu_custom_call.1} parent=1 // pred_check
      _
    $region23: #{tpu_custom_call.1} parent=1 // pred_check_branch
      %24 = sbr.rel (0) target = $region25
    $region24: #{tpu_custom_call.1} parent=1 // pred_region
      _
    $region25: #{tpu_custom_call.1} parent=1 // pred_fallthru
      _
    // Predicated region
    $region26: #{tpu_custom_call.1} parent=1 // pred_check
      _
    $region27: #{tpu_custom_call.1} parent=1 // pred_check_branch
      %26 = sbr.rel (0) target = $region29
    $region28: #{tpu_custom_call.1} parent=1 // pred_region
      _
    $region29: #{tpu_custom_call.1} parent=1 // pred_fallthru
      _
    %v27 = vld [vmem:[%s0] sm:$0xf]
    %v28 = vld [vmem:[%s1] sm:$0xff]
    %v29 = vld [vmem:[%s1 + $0x8] sm:$0xff]
    %v30 = vld [vmem:[%s1 + $0x10] sm:$0xff]
    %v31 = vld [vmem:[%s1 + $0x18] sm:$0xff]
    %v32 = vld [vmem:[%s1 + $0x20] sm:$0xff]
    %v33 = vld [vmem:[%s1 + $0x28] sm:$0xff]
    %v34 = vld [vmem:[%s1 + $0x30] sm:$0xff]
    %v35 = vld [vmem:[%s1 + $0x38] sm:$0xff]
    %v36 = vld [vmem:[%s2] sm:$0xff]
    %v37 = vld [vmem:[%s2 + $0x8] sm:$0xff]
    %v38 = vld [vmem:[%s2 + $0x10] sm:$0xff]
    %v39 = vld [vmem:[%s2 + $0x18] sm:$0xff]
    %v40 = vld [vmem:[%s2 + $0x20] sm:$0xff]
    %v41 = vld [vmem:[%s2 + $0x28] sm:$0xff]
    %v42 = vld [vmem:[%s2 + $0x30] sm:$0xff]
    %v43 = vld [vmem:[%s2 + $0x38] sm:$0xff]
    %45 = vset.pattern.permute.xlu0 0
    %46 = vperm.xlu0 %45, %v36
    %v47 = vpop.permute.xlu0 %46
    %50 = vset.pattern.permute.xlu0 0
    %51 = vperm.xlu0 %50, %v37
    %v52 = vpop.permute.xlu0 %51
    %55 = vset.pattern.permute.xlu0 0
    %56 = vperm.xlu0 %55, %v38
    %v57 = vpop.permute.xlu0 %56
    %60 = vset.pattern.permute.xlu0 0
    %61 = vperm.xlu0 %60, %v39
    %v62 = vpop.permute.xlu0 %61
    %65 = vset.pattern.permute.xlu0 0
    %66 = vperm.xlu0 %65, %v40
    %v67 = vpop.permute.xlu0 %66
    %70 = vset.pattern.permute.xlu0 0
    %71 = vperm.xlu0 %70, %v41
    %v72 = vpop.permute.xlu0 %71
    %75 = vset.pattern.permute.xlu0 0
    %76 = vperm.xlu0 %75, %v42
    %v77 = vpop.permute.xlu0 %76
    %80 = vset.pattern.permute.xlu0 0
    %81 = vperm.xlu0 %80, %v43
    %v82 = vpop.permute.xlu0 %81
    %vm84 = vcmask 31744
    %v86 = vsel %vm84, %v28, 0
    %v89 = vsel %vm84, %v29, 0
    %v92 = vsel %vm84, %v30, 0
    %v95 = vsel %vm84, %v31, 0
    %v98 = vsel %vm84, %v32, 0
    %v101 = vsel %vm84, %v33, 0
    %v104 = vsel %vm84, %v34, 0
    %v107 = vsel %vm84, %v35, 0
    %vm109 = vcmask 1043456
    %v111 = vsel %vm109, %v27, 0
    %113 = vmatprep.subr.mxu0 0.0
    %114 = vmatpush1.msra.mxu0 0.0
    %115 = vmatprep.subr.mxu0 0.0
    %116 = vmatpush1.msra.mxu0 0.0
    %117 = vmatprep.subr.mxu0 0.0
    %118 = vmatpush1.msra.mxu0 0.0
    %119 = vmatprep.subr.mxu0 0.0
    %120 = vmatpush1.msra.mxu0 0.0
    %121 = vmatprep.subr.mxu0 0.0
    %122 = vmatpush1.msra.mxu0 0.0
    %123 = vmatprep.subr.mxu0 0.0
    %124 = vmatpush1.msra.mxu0 0.0
    %125 = vmatprep.subr.mxu0 0.0
    %126 = vmatpush1.msra.mxu0 0.0
    %127 = vmatprep.subr.mxu0 0.0
    %128 = vmatpush1.msra.mxu0 0.0
    %129 = vmatprep.subr.mxu0 0.0
    %130 = vmatpush1.msra.mxu0 0.0
    %131 = vmatprep.subr.mxu0 0.0
    %132 = vmatpush1.msra.mxu0 0.0
    %133 = vmatprep.subr.mxu0 0.0
    %134 = vmatpush1.msra.mxu0 0.0
    %135 = vmatprep.subr.mxu0 0.0
    %136 = vmatpush1.msra.mxu0 0.0
    %137 = vmatprep.subr.mxu0 0.0
    %138 = vmatpush1.msra.mxu0 0.0
    %139 = vmatprep.subr.mxu0 0.0
    %140 = vmatpush1.msra.mxu0 0.0
    %141 = vmatprep.subr.mxu0 0.0
    %142 = vmatpush1.msra.mxu0 0.0
    %143 = vmatprep.subr.mxu0 0.0
    %144 = vmatpush1.msra.mxu0 %v111
    %145 = vmatprep.subr.mxu0 0.0
    %146 = vmatpush2.msra.mxu0 0.0
    %147 = vmatprep.subr.mxu0 0.0
    %148 = vmatpush2.msra.mxu0 0.0
    %149 = vmatprep.subr.mxu0 0.0
    %150 = vmatpush2.msra.mxu0 0.0
    %151 = vmatprep.subr.mxu0 0.0
    %152 = vmatpush2.msra.mxu0 0.0
    %153 = vmatprep.subr.mxu0 0.0
    %154 = vmatpush2.msra.mxu0 0.0
    %155 = vmatprep.subr.mxu0 0.0
    %156 = vmatpush2.msra.mxu0 0.0
    %157 = vmatprep.subr.mxu0 0.0
    %158 = vmatpush2.msra.mxu0 0.0
    %159 = vmatprep.subr.mxu0 0.0
    %160 = vmatpush2.msra.mxu0 0.0
    %161 = vmatprep.subr.mxu0 0.0
    %162 = vmatpush2.msra.mxu0 0.0
    %163 = vmatprep.subr.mxu0 0.0
    %164 = vmatpush2.msra.mxu0 0.0
    %165 = vmatprep.subr.mxu0 0.0
    %166 = vmatpush2.msra.mxu0 0.0
    %167 = vmatprep.subr.mxu0 0.0
    %168 = vmatpush2.msra.mxu0 0.0
    %169 = vmatprep.subr.mxu0 0.0
    %170 = vmatpush2.msra.mxu0 0.0
    %171 = vmatprep.subr.mxu0 0.0
    %172 = vmatpush2.msra.mxu0 0.0
    %173 = vmatprep.subr.mxu0 0.0
    %174 = vmatpush2.msra.mxu0 0.0
    %175 = vmatprep.subr.mxu0 0.0
    %176 = vmatpush2.msra.mxu0 0.0
    %177 = vmatprep.mubr.f32.mxu0 0.0
    %178 = vmatmul.mubr.f32.gmra.mxu0 %v86
    %v179 = vpop.f32.mrf.mxu0
    %v180 = vadd.f32 %v47, %v179
    %v181 = vpop.f32.mrf.mxu0
    %182 = vmatprep.mubr.f32.mxu0 0.0
    %183 = vmatmul.mubr.f32.gmra.mxu0 %v89
    %v184 = vpop.f32.mrf.mxu0
    %v185 = vadd.f32 %v52, %v184
    %v186 = vpop.f32.mrf.mxu0
    %187 = vmatprep.mubr.f32.mxu0 0.0
    %188 = vmatmul.mubr.f32.gmra.mxu0 %v92
    %v189 = vpop.f32.mrf.mxu0
    %v190 = vadd.f32 %v57, %v189
    %v191 = vpop.f32.mrf.mxu0
    %192 = vmatprep.mubr.f32.mxu0 0.0
    %193 = vmatmul.mubr.f32.gmra.mxu0 %v95
    %v194 = vpop.f32.mrf.mxu0
    %v195 = vadd.f32 %v62, %v194
    %v196 = vpop.f32.mrf.mxu0
    %197 = vmatprep.mubr.f32.mxu0 0.0
    %198 = vmatmul.mubr.f32.gmra.mxu0 %v98
    %v199 = vpop.f32.mrf.mxu0
    %v200 = vadd.f32 %v67, %v199
    %v201 = vpop.f32.mrf.mxu0
    %202 = vmatprep.mubr.f32.mxu0 0.0
    %203 = vmatmul.mubr.f32.gmra.mxu0 %v101
    %v204 = vpop.f32.mrf.mxu0
    %v205 = vadd.f32 %v72, %v204
    %v206 = vpop.f32.mrf.mxu0
    %207 = vmatprep.mubr.f32.mxu0 0.0
    %208 = vmatmul.mubr.f32.gmra.mxu0 %v104
    %v209 = vpop.f32.mrf.mxu0
    %v210 = vadd.f32 %v77, %v209
    %v211 = vpop.f32.mrf.mxu0
    %212 = vmatprep.mubr.f32.mxu0 0.0
    %213 = vmatmul.mubr.f32.gmra.mxu0 %v107
    %v214 = vpop.f32.mrf.mxu0
    %v215 = vadd.f32 %v82, %v214
    %v216 = vpop.f32.mrf.mxu0
    %217 = vdwg.mxu0
    %v218 = vmax.f32 %v180, 0.0
    %v219 = vmax.f32 %v185, 0.0
    %v220 = vmax.f32 %v190, 0.0
    %v221 = vmax.f32 %v195, 0.0
    %v222 = vmax.f32 %v200, 0.0
    %v223 = vmax.f32 %v205, 0.0
    %v224 = vmax.f32 %v210, 0.0
    %v225 = vmax.f32 %v215, 0.0
    %v226 = vld [vmem:[%s3] sm:$0xff]
    %v227 = vld [vmem:[%s3 + $0x8] sm:$0xff]
    %v228 = vld [vmem:[%s4] sm:$0xff]
    %v229 = vld [vmem:[%s4 + $0x8] sm:$0xff]
    %231 = vset.pattern.permute.xlu0 0
    %232 = vperm.xlu0 %231, %v228
    %v233 = vpop.permute.xlu0 %232
    %236 = vset.pattern.permute.xlu0 0
    %237 = vperm.xlu0 %236, %v229
    %v238 = vpop.permute.xlu0 %237
    %vm240 = vcmask 523264
    %v242 = vsel %vm240, %v226, 0
    %v245 = vsel %vm240, %v227, 0
    %247 = vmatprep.subr.mxu0 0.0
    %248 = vmatpush1.msra.mxu0 0.0
    %249 = vmatprep.subr.mxu0 0.0
    %250 = vmatpush1.msra.mxu0 0.0
    %251 = vmatprep.subr.mxu0 0.0
    %252 = vmatpush1.msra.mxu0 0.0
    %253 = vmatprep.subr.mxu0 0.0
    %254 = vmatpush1.msra.mxu0 0.0
    %255 = vmatprep.subr.mxu0 0.0
    %256 = vmatpush1.msra.mxu0 0.0
    %257 = vmatprep.subr.mxu0 0.0
    %258 = vmatpush1.msra.mxu0 0.0
    %259 = vmatprep.subr.mxu0 0.0
    %260 = vmatpush1.msra.mxu0 0.0
    %261 = vmatprep.subr.mxu0 0.0
    %262 = vmatpush1.msra.mxu0 0.0
    %263 = vmatprep.subr.mxu0 0.0
    %264 = vmatpush1.msra.mxu0 %v225
    %265 = vmatprep.subr.mxu0 0.0
    %266 = vmatpush1.msra.mxu0 %v224
    %267 = vmatprep.subr.mxu0 0.0
    %268 = vmatpush1.msra.mxu0 %v223
    %269 = vmatprep.subr.mxu0 0.0
    %270 = vmatpush1.msra.mxu0 %v222
    %271 = vmatprep.subr.mxu0 0.0
    %272 = vmatpush1.msra.mxu0 %v221
    %273 = vmatprep.subr.mxu0 0.0
    %274 = vmatpush1.msra.mxu0 %v220
    %275 = vmatprep.subr.mxu0 0.0
    %276 = vmatpush1.msra.mxu0 %v219
    %277 = vmatprep.subr.mxu0 0.0
    %278 = vmatpush1.msra.mxu0 %v218
    %279 = vmatprep.subr.mxu0 0.0
    %280 = vmatpush2.msra.mxu0 0.0
    %281 = vmatprep.subr.mxu0 0.0
    %282 = vmatpush2.msra.mxu0 0.0
    %283 = vmatprep.subr.mxu0 0.0
    %284 = vmatpush2.msra.mxu0 0.0
    %285 = vmatprep.subr.mxu0 0.0
    %286 = vmatpush2.msra.mxu0 0.0
    %287 = vmatprep.subr.mxu0 0.0
    %288 = vmatpush2.msra.mxu0 0.0
    %289 = vmatprep.subr.mxu0 0.0
    %290 = vmatpush2.msra.mxu0 0.0
    %291 = vmatprep.subr.mxu0 0.0
    %292 = vmatpush2.msra.mxu0 0.0
    %293 = vmatprep.subr.mxu0 0.0
    %294 = vmatpush2.msra.mxu0 0.0
    %295 = vmatprep.subr.mxu0 0.0
    %296 = vmatpush2.msra.mxu0 0.0
    %297 = vmatprep.subr.mxu0 0.0
    %298 = vmatpush2.msra.mxu0 0.0
    %299 = vmatprep.subr.mxu0 0.0
    %300 = vmatpush2.msra.mxu0 0.0
    %301 = vmatprep.subr.mxu0 0.0
    %302 = vmatpush2.msra.mxu0 0.0
    %303 = vmatprep.subr.mxu0 0.0
    %304 = vmatpush2.msra.mxu0 0.0
    %305 = vmatprep.subr.mxu0 0.0
    %306 = vmatpush2.msra.mxu0 0.0
    %307 = vmatprep.subr.mxu0 0.0
    %308 = vmatpush2.msra.mxu0 0.0
    %309 = vmatprep.subr.mxu0 0.0
    %310 = vmatpush2.msra.mxu0 0.0
    %311 = vmatprep.mubr.f32.mxu0 0.0
    %312 = vmatmul.mubr.f32.gmra.mxu0 %v242
    %v313 = vpop.f32.mrf.mxu0
    %v314 = vadd.f32 %v233, %v313
    %v315 = vpop.f32.mrf.mxu0
    %316 = vmatprep.mubr.f32.mxu0 0.0
    %317 = vmatmul.mubr.f32.gmra.mxu0 %v245
    %v318 = vpop.f32.mrf.mxu0
    %v319 = vadd.f32 %v238, %v318
    %v320 = vpop.f32.mrf.mxu0
    %321 = vdwg.mxu0
    %v322 = vmax.f32 %v314, 0.0
    %v323 = vmax.f32 %v319, 0.0
    %v324 = vld [vmem:[%s5] sm:$0x7]
    %v325 = vld [vmem:[%s6] sm:$0x7]
    %327 = vset.pattern.permute.xlu0 0
    %328 = vperm.xlu0 %327, %v325
    %v329 = vpop.permute.xlu0 %328
    %vm331 = vcmask 130048
    %v333 = vsel %vm331, %v324, 0
    %335 = vmatprep.subr.mxu0 0.0
    %336 = vmatpush1.msra.mxu0 0.0
    %337 = vmatprep.subr.mxu0 0.0
    %338 = vmatpush1.msra.mxu0 0.0
    %339 = vmatprep.subr.mxu0 0.0
    %340 = vmatpush1.msra.mxu0 0.0
    %341 = vmatprep.subr.mxu0 0.0
    %342 = vmatpush1.msra.mxu0 0.0
    %343 = vmatprep.subr.mxu0 0.0
    %344 = vmatpush1.msra.mxu0 0.0
    %345 = vmatprep.subr.mxu0 0.0
    %346 = vmatpush1.msra.mxu0 0.0
    %347 = vmatprep.subr.mxu0 0.0
    %348 = vmatpush1.msra.mxu0 0.0
    %349 = vmatprep.subr.mxu0 0.0
    %350 = vmatpush1.msra.mxu0 0.0
    %351 = vmatprep.subr.mxu0 0.0
    %352 = vmatpush1.msra.mxu0 0.0
    %353 = vmatprep.subr.mxu0 0.0
    %354 = vmatpush1.msra.mxu0 0.0
    %355 = vmatprep.subr.mxu0 0.0
    %356 = vmatpush1.msra.mxu0 0.0
    %357 = vmatprep.subr.mxu0 0.0
    %358 = vmatpush1.msra.mxu0 0.0
    %359 = vmatprep.subr.mxu0 0.0
    %360 = vmatpush1.msra.mxu0 0.0
    %361 = vmatprep.subr.mxu0 0.0
    %362 = vmatpush1.msra.mxu0 0.0
    %363 = vmatprep.subr.mxu0 0.0
    %364 = vmatpush1.msra.mxu0 %v323
    %365 = vmatprep.subr.mxu0 0.0
    %366 = vmatpush1.msra.mxu0 %v322
    %367 = vmatprep.subr.mxu0 0.0
    %368 = vmatpush2.msra.mxu0 0.0
    %369 = vmatprep.subr.mxu0 0.0
    %370 = vmatpush2.msra.mxu0 0.0
    %371 = vmatprep.subr.mxu0 0.0
    %372 = vmatpush2.msra.mxu0 0.0
    %373 = vmatprep.subr.mxu0 0.0
    %374 = vmatpush2.msra.mxu0 0.0
    %375 = vmatprep.subr.mxu0 0.0
    %376 = vmatpush2.msra.mxu0 0.0
    %377 = vmatprep.subr.mxu0 0.0
    %378 = vmatpush2.msra.mxu0 0.0
    %379 = vmatprep.subr.mxu0 0.0
    %380 = vmatpush2.msra.mxu0 0.0
    %381 = vmatprep.subr.mxu0 0.0
    %382 = vmatpush2.msra.mxu0 0.0
    %383 = vmatprep.subr.mxu0 0.0
    %384 = vmatpush2.msra.mxu0 0.0
    %385 = vmatprep.subr.mxu0 0.0
    %386 = vmatpush2.msra.mxu0 0.0
    %387 = vmatprep.subr.mxu0 0.0
    %388 = vmatpush2.msra.mxu0 0.0
    %389 = vmatprep.subr.mxu0 0.0
    %390 = vmatpush2.msra.mxu0 0.0
    %391 = vmatprep.subr.mxu0 0.0
    %392 = vmatpush2.msra.mxu0 0.0
    %393 = vmatprep.subr.mxu0 0.0
    %394 = vmatpush2.msra.mxu0 0.0
    %395 = vmatprep.subr.mxu0 0.0
    %396 = vmatpush2.msra.mxu0 0.0
    %397 = vmatprep.subr.mxu0 0.0
    %398 = vmatpush2.msra.mxu0 0.0
    %399 = vmatprep.mubr.f32.mxu0 0.0
    %400 = vmatmul.mubr.f32.gmra.mxu0 %v333
    %v401 = vpop.f32.mrf.mxu0
    %v402 = vadd.f32 %v329, %v401
    %v403 = vpop.f32.mrf.mxu0
    %404 = vdwg.mxu0
    %vm405 = vcmask 59392
    %v406 = vsel %vm405, %v402, -inf
    %v407 = vrot.slane %v406, 4
    %v408 = vmax.f32 %v406, %v407
    %v409 = vrot.slane %v408, 2
    %v410 = vmax.f32 %v408, %v409
    %v411 = vrot.slane %v410, 1
    %v412 = vmax.f32 %v410, %v411
    %v413 = vsub.f32 %v402, %v412
    %v414 = vmul.f32 %v413, 1.442695
    %v415 = vpow.pop %v414
    %v416 = vsel %vm405, %v415, 0.0
    %v417 = vrot.slane %v416, 4
    %v418 = vadd.f32 %v416, %v417
    %v419 = vrot.slane %v418, 2
    %v420 = vadd.f32 %v418, %v419
    %v421 = vrot.slane %v420, 1
    %v422 = vadd.f32 %v420, %v421
    %v423 = vrcp.pop %v422
    %v424 = vmul.f32 %v415, %v423
    %425 = vst.msk [vmem:[#allocation2] sm:$0x7] %vm405, %v424
    // Predicated region
    $region30: #{tpu_custom_call.1} parent=1 // pred_check
      _
    $region31: #{tpu_custom_call.1} parent=1 // pred_check_branch
      %427 = sbr.rel (0) target = $region33
    $region32: #{tpu_custom_call.1} parent=1 // pred_region
      %s429 = ssub.s32 64, 64
      %430 = vsyncadd [#allocation3], %s429
      %s432 = sshll.u32 [#allocation2], 4
      %s433 = int_to_ptr.vmem [resolvable:$true] %s432
      %435 = dma.vmem_to_hbm [thread:$0]  %s433, 64, %s7, [#allocation3]
    $region33: #{tpu_custom_call.1} parent=1 // pred_fallthru
      _
    // Predicated region
    $region34: #{tpu_custom_call.1} parent=1 // pred_check
      _
    $region35: #{tpu_custom_call.1} parent=1 // pred_check_branch
      %437 = sbr.rel (0) target = $region37
    $region36: #{tpu_custom_call.1} parent=1 // pred_region
      %438 = dma.done [#allocation3], 64
    $region37: #{tpu_custom_call.1} parent=1 // pred_fallthru
      _
    %439 = vsyncpa [#allocation3], 1

</llo_original>
